<compile_context>
chip_gen: v5e
topology: v5e:2x2
jax: 0.10.0
libtpu: 0.0.40
codegen_flags: <defaults>
</compile_context>

<pallas_src>
import functools

import jax
import jax.numpy as jnp
from jax import lax
from jax.experimental import pallas as pl
from jax.experimental.pallas import tpu as pltpu


def _round_up(x, m):
    return ((x + m - 1) // m) * m


def _pick_tile(padded_dim, align, cap):
    """Pick a tile size (multiple of `align`, <= cap) minimizing extra padding.

    `padded_dim` is already a multiple of `align`.  If it fits under `cap`,
    use the whole dim (zero padding, one grid step).  Otherwise scan tile
    candidates from large to small and keep the largest one with minimal
    extra padding (a zero-pad divisor wins immediately).
    """
    if padded_dim <= cap:
        return padded_dim
    best_t, best_pad = align, None
    t = (cap // align) * align
    while t >= align:
        pad = (-padded_dim) % t
        if best_pad is None or pad < best_pad:
            best_pad, best_t = pad, t
            if pad == 0:
                break
        t -= align
    return best_t


def _linear_kernel_accum_out(x_ref, w_ref, b_ref, o_ref):
    """f32 output: accumulate directly into the resident output tile."""
    k = pl.program_id(2)

    @pl.when(k == 0)
    def _():
        # Seed the accumulator with the bias (added exactly once per tile).
        o_ref[...] = jnp.broadcast_to(
            b_ref[...].astype(o_ref.dtype), o_ref.shape
        )

    # x tile (tm, tk) contracted with W tile (tn, tk) along K -> (tm, tn).
    o_ref[...] += lax.dot_general(
        x_ref[...],
        w_ref[...],
        dimension_numbers=(((1,), (1,)), ((), ())),
        preferred_element_type=jnp.float32,
    )


def _linear_kernel_scratch(x_ref, w_ref, b_ref, o_ref, acc_ref):
    """Non-f32 output: f32 scratch accumulator, cast once at finalize."""
    k = pl.program_id(2)

    @pl.when(k == 0)
    def _():
        acc_ref[...] = jnp.zeros_like(acc_ref)

    acc_ref[...] += lax.dot_general(
        x_ref[...],
        w_ref[...],
        dimension_numbers=(((1,), (1,)), ((), ())),
        preferred_element_type=jnp.float32,
    )

    @pl.when(k == pl.num_programs(2) - 1)
    def _():
        o_ref[...] = (
            acc_ref[...] + b_ref[...].astype(jnp.float32)
        ).astype(o_ref.dtype)


@functools.partial(jax.jit, static_argnames=("compute_dtype",))
def linear_pallas(x, weight, bias, *, compute_dtype=None):
    """PyTorch nn.Linear forward: y = x @ weight.T + bias.

    x:      (M, K)
    weight: (N, K)  -- PyTorch (out_features, in_features) layout, used as-is
                       (no wrapper-side transpose).
    bias:   (N,)
    compute_dtype: optional dtype (e.g. jnp.bfloat16) for the MXU inputs.
                   Accumulation stays f32.  For repeated inference prefer
                   storing the weight already in the compute dtype.
    """
    M, K = x.shape
    N, Kw = weight.shape
    assert Kw == K and bias.shape == (N,)
    out_dtype = x.dtype

    if compute_dtype is not None:
        x = x.astype(compute_dtype)
        weight = weight.astype(compute_dtype)

    itemsize = jnp.dtype(x.dtype).itemsize
    # Sublane alignment for the M axis depends on packing of the compute dtype.
    m_align = 8 if itemsize >= 4 else (16 if itemsize == 2 else 32)

    # ---- Padding-aware tile selection (lane dims aligned to 128). ----
    Ma = _round_up(M, m_align)
    Ka = _round_up(K, 128)
    Na = _round_up(N, 128)
    tm = _pick_tile(Ma, m_align, 512)
    tn = _pick_tile(Na, 128, 512)
    tk = _pick_tile(Ka, 128, 1024)
    Mp = _round_up(Ma, tm)
    Kp = _round_up(Ka, tk)
    Np = _round_up(Na, tn)

    # ---- Pad only when actually needed (zero-padding K is a no-op for the
    # reduction; padding N gives lane-dense, unmasked output stores). ----
    x_p = x if (Mp, Kp) == (M, K) else jnp.pad(x, ((0, Mp - M), (0, Kp - K)))
    w_p = (
        weight
        if (Np, Kp) == (N, K)
        else jnp.pad(weight, ((0, Np - N), (0, Kp - K)))
    )
    b_p = bias.reshape(1, N)
    if Np != N:
        b_p = jnp.pad(b_p, ((0, 0), (0, Np - N)))

    grid = (Mp // tm, Np // tn, Kp // tk)

    # Accumulate straight into the output tile when it is f32 (saves the
    # scratch buffer and one full-tile VMEM copy); otherwise use f32 scratch.
    use_scratch = out_dtype != jnp.float32
    kernel = _linear_kernel_scratch if use_scratch else _linear_kernel_accum_out
    scratch_shapes = (
        [pltpu.VMEM((tm, tn), jnp.float32)] if use_scratch else []
    )

    cost = pl.CostEstimate(
        flops=2 * Mp * Np * Kp,
        transcendentals=0,
        bytes_accessed=(
            Mp * Kp * x_p.dtype.itemsize
            + Np * Kp * w_p.dtype.itemsize
            + Np * b_p.dtype.itemsize
            + Mp * Np * jnp.dtype(out_dtype).itemsize
        ),
    )

    out_p = pl.pallas_call(
        kernel,
        out_shape=jax.ShapeDtypeStruct((Mp, Np), out_dtype),
        grid_spec=pltpu.PrefetchScalarGridSpec(
            num_scalar_prefetch=0,
            grid=grid,
            in_specs=[
                pl.BlockSpec((tm, tk), lambda i, j, k: (i, k)),  # x tile
                pl.BlockSpec((tn, tk), lambda i, j, k: (j, k)),  # W tile (N,K)
                pl.BlockSpec((1, tn), lambda i, j, k: (0, j)),   # bias slice
            ],
            out_specs=pl.BlockSpec((tm, tn), lambda i, j, k: (i, j)),
            scratch_shapes=scratch_shapes,
        ),
        compiler_params=pltpu.CompilerParams(
            # M/N tiles are independent -> megacore sharding on v7x;
            # K is the reduction axis and must stay sequential.
            dimension_semantics=("parallel", "parallel", "arbitrary"),
            vmem_limit_bytes=48 * 1024 * 1024,
        ),
        cost_estimate=cost,
    )(x_p, w_p, b_p)

    if (Mp, Np) == (M, N):
        return out_p
    return out_p[:M, :N]


if __name__ == "__main__":
    key = jax.random.PRNGKey(0)
    kx, kw, kb, kx2, kw2, kb2 = jax.random.split(key, 6)

    # ---- Small shape matching the module's toy config (exercises padding). ----
    input_dim, output_dim, batch = 32, 64, 8
    bound = 1.0 / (input_dim ** 0.5)
    weight = jax.random.uniform(kw, (output_dim, input_dim), jnp.float32, -bound, bound)
    bias = jax.random.uniform(kb, (output_dim,), jnp.float32, -bound, bound)
    x = jax.random.normal(kx, (batch, input_dim), jnp.float32)

    out = linear_pallas(x, weight, bias)
    jax.block_until_ready(out)
    ref = x @ weight.T + bias
    assert out.shape == (batch, output_dim)
    assert jnp.allclose(out, ref, atol=1e-5, rtol=1e-5), "small-shape mismatch"

    # ---- Larger shape: multi-step K reduction; tile picker keeps zero padding
    # (K=1536 -> tk=768, N=384 -> tn=384, M=256 -> tm=256). ----
    M2, K2, N2 = 256, 1536, 384
    bound2 = 1.0 / (K2 ** 0.5)
    weight2 = jax.random.uniform(kw2, (N2, K2), jnp.float32, -bound2, bound2)
    bias2 = jax.random.uniform(kb2, (N2,), jnp.float32, -bound2, bound2)
    x2 = jax.random.normal(kx2, (M2, K2), jnp.float32)

    out2 = linear_pallas(x2, weight2, bias2)
    jax.block_until_ready(out2)
    ref2 = x2 @ weight2.T + bias2
    assert out2.shape == (M2, N2)
    assert jnp.allclose(out2, ref2, atol=2e-2, rtol=2e-2), "tiled-shape mismatch"

    # ---- bf16 MXU-input path (all generations), f32 output/accumulation. ----
    out_bf16 = linear_pallas(x2, weight2, bias2, compute_dtype=jnp.bfloat16)
    jax.block_until_ready(out_bf16)
    assert jnp.allclose(out_bf16, ref2, atol=1e-1, rtol=1e-1), "bf16 path mismatch"

    # ---- bf16 output dtype: exercises the scratch-accumulator kernel variant. ----
    out_bf = linear_pallas(
        x2.astype(jnp.bfloat16), weight2.astype(jnp.bfloat16), bias2
    )
    jax.block_until_ready(out_bf)
    assert out_bf.dtype == jnp.bfloat16
    assert jnp.allclose(
        out_bf.astype(jnp.float32), ref2, atol=2e-1, rtol=2e-1
    ), "bf16-output path mismatch"

    print("KERNEL_OK")
</pallas_src>

<mosaic_0001>
module attributes {stable_mosaic.version = 11 : i64} {
  func.func @_linear_kernel_accum_out(%arg0: i32, %arg1: i32, %arg2: i32, %arg3: memref<8x128xf32, #tpu.memory_space<vmem>>, %arg4: memref<128x128xf32, #tpu.memory_space<vmem>>, %arg5: memref<1x128xf32, #tpu.memory_space<vmem>>, %arg6: memref<8x128xf32, #tpu.memory_space<vmem>>) attributes {dimension_semantics = [#tpu.dimension_semantics<parallel>, #tpu.dimension_semantics<parallel>, #tpu.dimension_semantics<arbitrary>], iteration_bounds = array<i64: 1, 1, 1>, scalar_prefetch = 0 : i64, scratch_operands = 0 : i64, tpu.core_type = #tpu.core_type<tc>, window_params = [{transform_indices = @transform_0, window_bounds = array<i64: 8, 128>}, {transform_indices = @transform_1, window_bounds = array<i64: 128, 128>}, {transform_indices = @transform_2, window_bounds = array<i64: 1, 128>}, {transform_indices = @transform_3, window_bounds = array<i64: 8, 128>}]} {
    %c0_i32 = arith.constant 0 : i32
    %0 = arith.cmpi eq, %arg2, %c0_i32 : i32
    %1 = arith.extui %0 : i1 to i32
    %c0_i32_0 = arith.constant 0 : i32
    %2 = arith.cmpi ne, %1, %c0_i32_0 : i32
    scf.if %2 {
      %c0_8 = arith.constant 0 : index
      %c0_9 = arith.constant 0 : index
      %9 = vector.load %arg5[%c0_8, %c0_9] : memref<1x128xf32, #tpu.memory_space<vmem>>, vector<1x128xf32>
      %10 = vector.shape_cast %9 : vector<1x128xf32> to vector<1x128xf32>
      %11 = vector.broadcast %10 : vector<1x128xf32> to vector<8x128xf32>
      %c0_10 = arith.constant 0 : index
      %c0_11 = arith.constant 0 : index
      %12 = vector.load %arg6[%c0_10, %c0_11] : memref<8x128xf32, #tpu.memory_space<vmem>>, vector<8x128xf32>
      tpu.vector_store %arg6[%c0_10, %c0_11], %11 {strides = array<i32>} : memref<8x128xf32, #tpu.memory_space<vmem>>, vector<8x128xf32>,
    } else {
    }
    %c0 = arith.constant 0 : index
    %c0_1 = arith.constant 0 : index
    %3 = vector.load %arg6[%c0, %c0_1] : memref<8x128xf32, #tpu.memory_space<vmem>>, vector<8x128xf32>
    %c0_2 = arith.constant 0 : index
    %c0_3 = arith.constant 0 : index
    %4 = vector.load %arg3[%c0_2, %c0_3] : memref<8x128xf32, #tpu.memory_space<vmem>>, vector<8x128xf32>
    %c0_4 = arith.constant 0 : index
    %c0_5 = arith.constant 0 : index
    %5 = vector.load %arg4[%c0_4, %c0_5] : memref<128x128xf32, #tpu.memory_space<vmem>>, vector<128x128xf32>
    %cst = arith.constant dense<0.000000e+00> : vector<8x128xf32>
    %6 = tpu.matmul %4, %5, %cst {dimension_numbers = #tpu.dot_dimension_numbers<[1], [1], [0], [0], [0, 0, 1, 0], [], []>} : vector<8x128xf32>, vector<128x128xf32>, vector<8x128xf32> -> vector<8x128xf32>
    %7 = arith.addf %3, %6 : vector<8x128xf32>
    %c0_6 = arith.constant 0 : index
    %c0_7 = arith.constant 0 : index
    %8 = vector.load %arg6[%c0_6, %c0_7] : memref<8x128xf32, #tpu.memory_space<vmem>>, vector<8x128xf32>
    tpu.vector_store %arg6[%c0_6, %c0_7], %7 {strides = array<i32>} : memref<8x128xf32, #tpu.memory_space<vmem>>, vector<8x128xf32>,
    return
  }
  func.func @transform_0(%arg0: i32, %arg1: i32, %arg2: i32) -> (i32, i32) {
    %c0_i32 = arith.constant 0 : i32
    return %arg0, %arg2 : i32, i32
  }
  func.func @transform_1(%arg0: i32, %arg1: i32, %arg2: i32) -> (i32, i32) {
    %c0_i32 = arith.constant 0 : i32
    return %arg1, %arg2 : i32, i32
  }
  func.func @transform_2(%arg0: i32, %arg1: i32, %arg2: i32) -> (i32, i32) {
    %c0_i32 = arith.constant 0 : i32
    %c0_i32_0 = arith.constant 0 : i32
    return %c0_i32, %arg1 : i32, i32
  }
  func.func @transform_3(%arg0: i32, %arg1: i32, %arg2: i32) -> (i32, i32) {
    %c0_i32 = arith.constant 0 : i32
    return %arg0, %arg1 : i32, i32
  }
}

</mosaic_0001>

<llo_original>
// kernel: linear_pallas.1
$region0: #{linear_pallas.1}
  #allocation0 [shape = 'u32[]', space=smem, size = 0x4, offset = 0x4, fixed_abs, tag = 'smem constant byte address 0x4 - core index']
  #allocation1 [shape = 'u32[72,128]{1,0:T(1,128)}', space=vmem, size = 0x9000, scoped, tag = 'internal scratch']
  %s0 = inlined_call_operand.vmem [shape: f32[8,128], index: 0, kind: input, shape index: {}]
  %s1 = inlined_call_operand.vmem [shape: f32[128,128], index: 1, kind: input, shape index: {}]
  %s2 = inlined_call_operand.vmem [shape: f32[1,128], index: 2, kind: input, shape index: {}]
  %s3 = inlined_call_operand.hbm [shape: f32[8,128], index: 3, kind: output, shape index: {}]
  %s4 = sld [smem:[#allocation0]]
  $region26: #{linear_pallas.1} parent=0
    _
  %s6 = ssub.s32 1, %s4
  %s7 = scalar_select 0, %s6, %s4
  $region1: #{linear_pallas.1} parent=0
    #allocation2 [shape = 'u8[4096]{0}', space=vmem, size = 0x1000, scoped, tag = 'output window, operand 0, single buffered']
    #allocation3 [shape = 's32[1]{0}', space=sflag, size = 0x4, scoped, tag = 'scoped memory for linear_pallas.1']
    %8 = vsyncpa [#allocation3], 0
    // Predicated region
    $region2: #{linear_pallas.1} parent=1 // pred_check
      _
    $region3: #{linear_pallas.1} parent=1 // pred_check_branch
      %10 = sbr.rel (0) target = $region5
    $region4: #{linear_pallas.1} parent=1 // pred_region
      _
    $region5: #{linear_pallas.1} parent=1 // pred_fallthru
      _
    // Predicated region
    $region6: #{linear_pallas.1} parent=1 // pred_check
      _
    $region7: #{linear_pallas.1} parent=1 // pred_check_branch
      %12 = sbr.rel (0) target = $region9
    $region8: #{linear_pallas.1} parent=1 // pred_region
      _
    $region9: #{linear_pallas.1} parent=1 // pred_fallthru
      _
    // Predicated region
    $region10: #{linear_pallas.1} parent=1 // pred_check
      _
    $region11: #{linear_pallas.1} parent=1 // pred_check_branch
      %14 = sbr.rel (0) target = $region13
    $region12: #{linear_pallas.1} parent=1 // pred_region
      _
    $region13: #{linear_pallas.1} parent=1 // pred_fallthru
      _
    %p15 = scmp.eq.s32.totalorder 0, 0
    // Predicated region
    $region14: #{linear_pallas.1} parent=1 // pred_check
      %p16 = pneg %p15
    $region15: #{linear_pallas.1} parent=1 // pred_check_branch
      %18 = sbr.rel (%p16) target = $region17
    $region16: #{linear_pallas.1} parent=1 // pred_region
      %v19 = vld [vmem:[%s2] sm:$0x1]
      %v21 = vperm.slane %v19, 0
      %23 = vst [vmem:[#allocation2] sm:$0xff] %v21
    $region17: #{linear_pallas.1} parent=1 // pred_fallthru
      _
    %v24 = vld [vmem:[#allocation2] sm:$0xff]
    %v25 = vld [vmem:[%s0] sm:$0xff]
    %v26 = vld [vmem:[%s1] sm:$0xff]
    %v27 = vld [vmem:[%s1 + $0x8] sm:$0xff]
    %v28 = vld [vmem:[%s1 + $0x10] sm:$0xff]
    %v29 = vld [vmem:[%s1 + $0x18] sm:$0xff]
    %v30 = vld [vmem:[%s1 + $0x20] sm:$0xff]
    %v31 = vld [vmem:[%s1 + $0x28] sm:$0xff]
    %v32 = vld [vmem:[%s1 + $0x30] sm:$0xff]
    %v33 = vld [vmem:[%s1 + $0x38] sm:$0xff]
    %v34 = vld [vmem:[%s1 + $0x40] sm:$0xff]
    %v35 = vld [vmem:[%s1 + $0x48] sm:$0xff]
    %v36 = vld [vmem:[%s1 + $0x50] sm:$0xff]
    %v37 = vld [vmem:[%s1 + $0x58] sm:$0xff]
    %v38 = vld [vmem:[%s1 + $0x60] sm:$0xff]
    %v39 = vld [vmem:[%s1 + $0x68] sm:$0xff]
    %v40 = vld [vmem:[%s1 + $0x70] sm:$0xff]
    %v41 = vld [vmem:[%s1 + $0x78] sm:$0xff]
    %42 = vmatpush.xpose.msra.mxu0 %v41
    %43 = vmatpush.xpose.msra.mxu0 %v40
    %44 = vmatpush.xpose.msra.mxu0 %v39
    %45 = vmatpush.xpose.msra.mxu0 %v38
    %46 = vmatpush.xpose.msra.mxu0 %v37
    %47 = vmatpush.xpose.msra.mxu0 %v36
    %48 = vmatpush.xpose.msra.mxu0 %v35
    %49 = vmatpush.xpose.msra.mxu0 %v34
    %50 = vmatpush.xpose.msra.mxu0 %v33
    %51 = vmatpush.xpose.msra.mxu0 %v32
    %52 = vmatpush.xpose.msra.mxu0 %v31
    %53 = vmatpush.xpose.msra.mxu0 %v30
    %54 = vmatpush.xpose.msra.mxu0 %v29
    %55 = vmatpush.xpose.msra.mxu0 %v28
    %56 = vmatpush.xpose.msra.mxu0 %v27
    %57 = vmatpush.xpose.msra.mxu0 %v26
    %58 = vmatmul.f32.gmra.mxu0 %v25
    %v59 = vpop.f32.mrf.mxu0
    %v60 = vadd.f32 0.0, %v59
    %61 = vdwg.mxu0
    %v62 = vadd.f32 %v24, %v60
    %63 = vst [vmem:[#allocation2] sm:$0xff] %v62
    // Predicated region
    $region18: #{linear_pallas.1} parent=1 // pred_check
      _
    $region19: #{linear_pallas.1} parent=1 // pred_check_branch
      %65 = sbr.rel (0) target = $region21
    $region20: #{linear_pallas.1} parent=1 // pred_region
      %67 = vsyncadd [#allocation3], 0
      %s69 = sshll.u32 [#allocation2], 4
      %s70 = int_to_ptr.vmem [resolvable:$true] %s69
      %s71 = sshll.u32 %s3, 4
      %s72 = int_to_ptr.hbm [resolvable:$true] %s71
      %74 = dma.vmem_to_hbm [thread:$0]  %s70, 128, %s72, [#allocation3]
    $region21: #{linear_pallas.1} parent=1 // pred_fallthru
      _
    // Predicated region
    $region22: #{linear_pallas.1} parent=1 // pred_check
      _
    $region23: #{linear_pallas.1} parent=1 // pred_check_branch
      %76 = sbr.rel (0) target = $region25
    $region24: #{linear_pallas.1} parent=1 // pred_region
      %78 = dma.done [#allocation3], 128
    $region25: #{linear_pallas.1} parent=1 // pred_fallthru
      _
    %79 = vsyncpa [#allocation3], 1

</llo_original>
